<compile_context>
chip_gen: v6e
topology: v6e:2x2x1
jax: 0.10.0
libtpu: 0.0.40
codegen_flags: <defaults>
</compile_context>

<pallas_src>
import jax
import jax.numpy as jnp
import numpy as np
from jax import lax
from jax.experimental import pallas as pl
from jax.experimental.pallas import tpu as pltpu


def _bbox_head_kernel(x_ref, wt_ref, b_ref, o_ref):
    # x_ref:  (bn, Cin, t_hw)  activation tile, spatial on lanes (lane-dense)
    # wt_ref: (Cin, Cout)      transposed 1x1 conv weight (VMEM-resident)
    # b_ref:  (1, Cout)        bias row, f32 (VMEM-resident)
    # o_ref:  (bn, t_hw, Cout) channel-last output tile (fused NHWC permute)
    bn = x_ref.shape[0]
    bias = b_ref[...]                                      # (1, Cout) f32
    for b in range(bn):                                    # static small unroll
        acc = lax.dot_general(
            x_ref[b], wt_ref[...],
            dimension_numbers=(((0,), (0,)), ((), ())),    # x_tile^T @ W^T
            preferred_element_type=jnp.float32)            # (t_hw, Cout) f32
        o_ref[b] = (acc + bias).astype(o_ref.dtype)


def bbox_head_forward(x_nchw, weight, bias, *, num_anchors=3,
                      target_x_tile_bytes=2 * 1024 * 1024, max_t_hw=4096):
    """RetinaFace BboxHead forward.

    x_nchw: (N, Cin, H, W); weight: (Cout, Cin) or (Cout, Cin, 1, 1);
    bias: (Cout,).  Returns (N, H*W*num_anchors, 4) exactly matching
    permute(0,2,3,1).contiguous().view(N, -1, 4) of the 1x1 conv output.
    """
    N, Cin, H, W = x_nchw.shape
    w2d = weight.reshape(weight.shape[0], Cin)             # squeeze 1x1 kernel
    Cout = w2d.shape[0]
    assert Cout == num_anchors * 4
    HW = H * W
    itemsize = np.dtype(x_nchw.dtype).itemsize

    # ---- spatial-lane tile and batch packing --------------------------------
    lanes = max(128, target_x_tile_bytes // (Cin * itemsize))
    lanes = min(lanes, max_t_hw)
    lanes = max(128, (lanes // 128) * 128)                 # multiple of 128 lanes
    if HW > lanes:
        t_hw = lanes                                       # ragged tail masked by Pallas
        bn = 1
    else:
        t_hw = HW                                          # full spatial dim (legal block)
        hw_pad_l = pl.cdiv(HW, 128) * 128
        bn = max(1, min(N, lanes // hw_pad_l))             # pack several images per step
        while N % bn:                                      # keep batch blocks exact
            bn -= 1
    grid = (pl.cdiv(N, bn), pl.cdiv(HW, t_hw))

    x_flat = x_nchw.reshape(N, Cin, HW)                    # pure view of NCHW
    w_t = jnp.transpose(w2d).astype(x_nchw.dtype)          # (Cin, Cout), tiny
    b_row = bias.reshape(1, Cout).astype(jnp.float32)      # f32 bias for the f32 acc

    # ---- explicit VMEM budget (double-buffered tiles + resident params) -----
    hw_pad = pl.cdiv(t_hw, 128) * 128
    cin_pad = pl.cdiv(Cin, 8) * 8
    cout_pad = pl.cdiv(Cout, 128) * 128
    x_buf = bn * cin_pad * hw_pad * itemsize
    o_buf = bn * hw_pad * cout_pad * itemsize
    w_buf = cin_pad * cout_pad * itemsize
    b_buf = 8 * cout_pad * 4
    vmem_limit = int(2 * (x_buf + o_buf + w_buf + b_buf) + (2 << 20))

    cost = pl.CostEstimate(
        flops=2 * N * HW * Cin * Cout,
        transcendentals=0,
        bytes_accessed=int(x_flat.size * itemsize + w_t.size * itemsize
                           + b_row.size * 4 + N * HW * Cout * itemsize))

    out = pl.pallas_call(
        _bbox_head_kernel,
        out_shape=jax.ShapeDtypeStruct((N, HW, Cout), x_nchw.dtype),
        grid_spec=pltpu.PrefetchScalarGridSpec(
            num_scalar_prefetch=0,
            grid=grid,
            in_specs=[
                # activation tiles sliced straight out of NCHW
                pl.BlockSpec((bn, Cin, t_hw), lambda n, j: (n, 0, j)),
                # constant-index blocks: VMEM-resident across all grid steps
                pl.BlockSpec((Cin, Cout), lambda n, j: (0, 0)),
                pl.BlockSpec((1, Cout), lambda n, j: (0, 0)),
            ],
            # channel-last output tile: NHWC permute is fused, no wrapper transpose
            out_specs=pl.BlockSpec((bn, t_hw, Cout), lambda n, j: (n, j, 0)),
        ),
        compiler_params=pltpu.CompilerParams(
            dimension_semantics=("parallel", "parallel"),
            vmem_limit_bytes=vmem_limit),
        cost_estimate=cost,
    )(x_flat, w_t, b_row)

    # permute(0,2,3,1).contiguous().view(N,-1,4) == row-major relabel of (N, HW, Cout)
    return out.reshape(N, HW * num_anchors, 4)


if __name__ == "__main__":
    # Small shapes consistent with the module: in_dim=32, num_anchors=3,
    # batch=2, spatial 20x20.  HW=400 exercises the non-128-aligned spatial
    # path and the batch-packing path (one grid step covers both images).
    N, Cin, H, W = 2, 32, 20, 20
    num_anchors = 3
    Cout = num_anchors * 4

    key = jax.random.PRNGKey(0)
    kx, kw, kb = jax.random.split(key, 3)

    x = jax.random.normal(kx, (N, Cin, H, W), dtype=jnp.float32)
    bound = 1.0 / np.sqrt(Cin)
    weight = jax.random.uniform(kw, (Cout, Cin), jnp.float32, -bound, bound)
    bias = jax.random.uniform(kb, (Cout,), jnp.float32, -bound, bound)

    out = bbox_head_forward(x, weight, bias, num_anchors=num_anchors)
    out = jax.block_until_ready(out)

    # Pure-JAX reference (1x1 conv == channel matmul), NHWC then flattened.
    ref = jnp.einsum("nchw,oc->nhwo", x, weight) + bias
    ref = ref.reshape(N, H * W * num_anchors, 4)
    assert out.shape == (N, H * W * num_anchors, 4)
    np.testing.assert_allclose(np.asarray(out), np.asarray(ref),
                               rtol=1e-5, atol=1e-5)

    print("KERNEL_OK")
</pallas_src>

<mosaic_0001>
module attributes {stable_mosaic.version = 11 : i64} {
  func.func @_bbox_head_kernel(%arg0: i32, %arg1: i32, %arg2: memref<2x32x400xf32, #tpu.memory_space<vmem>>, %arg3: memref<32x12xf32, #tpu.memory_space<vmem>>, %arg4: memref<1x12xf32, #tpu.memory_space<vmem>>, %arg5: memref<2x400x12xf32, #tpu.memory_space<vmem>>) attributes {dimension_semantics = [#tpu.dimension_semantics<parallel>, #tpu.dimension_semantics<parallel>], iteration_bounds = array<i64: 1, 1>, scalar_prefetch = 0 : i64, scratch_operands = 0 : i64, tpu.core_type = #tpu.core_type<tc>, window_params = [{transform_indices = @transform_0, window_bounds = array<i64: 2, 32, 400>}, {pipeline_mode = #tpu.pipeline_mode<synchronous>, transform_indices = @transform_1, window_bounds = array<i64: 32, 12>}, {pipeline_mode = #tpu.pipeline_mode<synchronous>, transform_indices = @transform_2, window_bounds = array<i64: 1, 12>}, {transform_indices = @transform_3, window_bounds = array<i64: 2, 400, 12>}]} {
    %c0 = arith.constant 0 : index
    %c0_0 = arith.constant 0 : index
    %0 = vector.load %arg4[%c0, %c0_0] : memref<1x12xf32, #tpu.memory_space<vmem>>, vector<1x12xf32>
    %c0_1 = arith.constant 0 : index
    %c0_2 = arith.constant 0 : index
    %c0_3 = arith.constant 0 : index
    %1 = vector.load %arg2[%c0_1, %c0_2, %c0_3] : memref<2x32x400xf32, #tpu.memory_space<vmem>>, vector<1x32x400xf32>
    %2 = vector.shape_cast %1 : vector<1x32x400xf32> to vector<32x400xf32>
    %c0_4 = arith.constant 0 : index
    %c0_5 = arith.constant 0 : index
    %3 = vector.load %arg3[%c0_4, %c0_5] : memref<32x12xf32, #tpu.memory_space<vmem>>, vector<32x12xf32>
    %cst = arith.constant dense<0.000000e+00> : vector<400x12xf32>
    %4 = tpu.matmul %2, %3, %cst {dimension_numbers = #tpu.dot_dimension_numbers<[0], [0], [1], [1], [0, 1, 1, 1], [], []>} : vector<32x400xf32>, vector<32x12xf32>, vector<400x12xf32> -> vector<400x12xf32>
    %5 = vector.broadcast %0 : vector<1x12xf32> to vector<400x12xf32>
    %6 = arith.addf %4, %5 : vector<400x12xf32>
    %c0_6 = arith.constant 0 : index
    %c0_7 = arith.constant 0 : index
    %c0_8 = arith.constant 0 : index
    %7 = vector.load %arg5[%c0_6, %c0_7, %c0_8] : memref<2x400x12xf32, #tpu.memory_space<vmem>>, vector<1x400x12xf32>
    %8 = vector.shape_cast %7 : vector<1x400x12xf32> to vector<400x12xf32>
    %9 = vector.shape_cast %6 : vector<400x12xf32> to vector<1x400x12xf32>
    tpu.vector_store %arg5[%c0_6, %c0_7, %c0_8], %9 {strides = array<i32>} : memref<2x400x12xf32, #tpu.memory_space<vmem>>, vector<1x400x12xf32>,
    %c1 = arith.constant 1 : index
    %c0_9 = arith.constant 0 : index
    %c0_10 = arith.constant 0 : index
    %10 = vector.load %arg2[%c1, %c0_9, %c0_10] : memref<2x32x400xf32, #tpu.memory_space<vmem>>, vector<1x32x400xf32>
    %11 = vector.shape_cast %10 : vector<1x32x400xf32> to vector<32x400xf32>
    %c0_11 = arith.constant 0 : index
    %c0_12 = arith.constant 0 : index
    %12 = vector.load %arg3[%c0_11, %c0_12] : memref<32x12xf32, #tpu.memory_space<vmem>>, vector<32x12xf32>
    %cst_13 = arith.constant dense<0.000000e+00> : vector<400x12xf32>
    %13 = tpu.matmul %11, %12, %cst_13 {dimension_numbers = #tpu.dot_dimension_numbers<[0], [0], [1], [1], [0, 1, 1, 1], [], []>} : vector<32x400xf32>, vector<32x12xf32>, vector<400x12xf32> -> vector<400x12xf32>
    %14 = vector.broadcast %0 : vector<1x12xf32> to vector<400x12xf32>
    %15 = arith.addf %13, %14 : vector<400x12xf32>
    %c1_14 = arith.constant 1 : index
    %c0_15 = arith.constant 0 : index
    %c0_16 = arith.constant 0 : index
    %16 = vector.load %arg5[%c1_14, %c0_15, %c0_16] : memref<2x400x12xf32, #tpu.memory_space<vmem>>, vector<1x400x12xf32>
    %17 = vector.shape_cast %16 : vector<1x400x12xf32> to vector<400x12xf32>
    %18 = vector.shape_cast %15 : vector<400x12xf32> to vector<1x400x12xf32>
    tpu.vector_store %arg5[%c1_14, %c0_15, %c0_16], %18 {strides = array<i32>} : memref<2x400x12xf32, #tpu.memory_space<vmem>>, vector<1x400x12xf32>,
    return
  }
  func.func @transform_0(%arg0: i32, %arg1: i32) -> (i32, i32, i32) {
    %c0_i32 = arith.constant 0 : i32
    %c0_i32_0 = arith.constant 0 : i32
    return %arg0, %c0_i32, %arg1 : i32, i32, i32
  }
  func.func @transform_1(%arg0: i32, %arg1: i32) -> (i32, i32) {
    %c0_i32 = arith.constant 0 : i32
    %c0_i32_0 = arith.constant 0 : i32
    %c0_i32_1 = arith.constant 0 : i32
    return %c0_i32, %c0_i32_0 : i32, i32
  }
  func.func @transform_2(%arg0: i32, %arg1: i32) -> (i32, i32) {
    %c0_i32 = arith.constant 0 : i32
    %c0_i32_0 = arith.constant 0 : i32
    %c0_i32_1 = arith.constant 0 : i32
    return %c0_i32, %c0_i32_0 : i32, i32
  }
  func.func @transform_3(%arg0: i32, %arg1: i32) -> (i32, i32, i32) {
    %c0_i32 = arith.constant 0 : i32
    %c0_i32_0 = arith.constant 0 : i32
    return %arg0, %arg1, %c0_i32 : i32, i32, i32
  }
}

</mosaic_0001>

<llo_original>
// kernel: tpu_custom_call.1
$region0: #{tpu_custom_call.1}
  #allocation0 [shape = 'u32[]', space=smem, size = 0x4, offset = 0x4, fixed_abs, tag = 'smem constant byte address 0x4 - core index']
  #allocation1 [shape = 'u32[144,128]{1,0:T(1,128)}', space=vmem, size = 0x12000, scoped, tag = 'internal scratch']
  %s0 = inlined_call_operand.hbm [shape: f32[2,32,400], index: 0, kind: input, shape index: {}]
  %s1 = inlined_call_operand.vmem [shape: f32[32,12], index: 1, kind: input, shape index: {}]
  %s2 = inlined_call_operand.vmem [shape: f32[1,12], index: 2, kind: input, shape index: {}]
  %s3 = inlined_call_operand.vmem [shape: f32[2,400,12], index: 3, kind: output, shape index: {}]
  %s4 = sld [smem:[#allocation0]]
  $region26: #{tpu_custom_call.1} parent=0
    _
  %s6 = ssub.s32 1, %s4
  %s7 = scalar_select 0, %s6, %s4
  $region1: #{tpu_custom_call.1} parent=0
    #allocation2 [shape = 'u8[131072]{0}', space=vmem, size = 0x20000, scoped, tag = 'input window, operand 0, single buffered']
    #allocation3 [shape = 's32[1]{0}', space=sflag, size = 0x4, scoped, tag = 'scoped memory for tpu_custom_call.1']
    %8 = vsyncpa [#allocation3], 0
    // Predicated region
    $region2: #{tpu_custom_call.1} parent=1 // pred_check
      _
    $region3: #{tpu_custom_call.1} parent=1 // pred_check_branch
      %10 = sbr.rel (0) target = $region5
    $region4: #{tpu_custom_call.1} parent=1 // pred_region
      %s12 = ssub.s32 4096, 4096
      %13 = vsyncadd [#allocation3], %s12
      %s14 = sshll.u32 [#allocation2], 4
      %s15 = int_to_ptr.vmem [resolvable:$true] %s14
      %20 = dma.hbm_to_vmem [thread:$0]  %s0, 4096, %s15, [#allocation3], 512, 512, 32
    $region5: #{tpu_custom_call.1} parent=1 // pred_fallthru
      _
    // Predicated region
    $region6: #{tpu_custom_call.1} parent=1 // pred_check
      _
    $region7: #{tpu_custom_call.1} parent=1 // pred_check_branch
      %22 = sbr.rel (0) target = $region9
    $region8: #{tpu_custom_call.1} parent=1 // pred_region
      _
    $region9: #{tpu_custom_call.1} parent=1 // pred_fallthru
      _
    // Predicated region
    $region10: #{tpu_custom_call.1} parent=1 // pred_check
      _
    $region11: #{tpu_custom_call.1} parent=1 // pred_check_branch
      %24 = sbr.rel (0) target = $region13
    $region12: #{tpu_custom_call.1} parent=1 // pred_region
      _
    $region13: #{tpu_custom_call.1} parent=1 // pred_fallthru
      _
    // Predicated region
    $region14: #{tpu_custom_call.1} parent=1 // pred_check
      _
    $region15: #{tpu_custom_call.1} parent=1 // pred_check_branch
      %26 = sbr.rel (0) target = $region17
    $region16: #{tpu_custom_call.1} parent=1 // pred_region
      %27 = dma.done [#allocation3], 4096
    $region17: #{tpu_custom_call.1} parent=1 // pred_fallthru
      _
    %v28 = vld [vmem:[%s2] sm:$0x1]
    %v29 = vld [vmem:[#allocation2] sm:$0xff]
    %v30 = vld [vmem:[#allocation2 + $0x8] sm:$0xff]
    %v31 = vld [vmem:[#allocation2 + $0x10] sm:$0xff]
    %v32 = vld [vmem:[#allocation2 + $0x18] sm:$0xff]
    %v33 = vld [vmem:[#allocation2 + $0x20] sm:$0xff]
    %v34 = vld [vmem:[#allocation2 + $0x28] sm:$0xff]
    %v35 = vld [vmem:[#allocation2 + $0x30] sm:$0xff]
    %v36 = vld [vmem:[#allocation2 + $0x38] sm:$0xff]
    %v37 = vld [vmem:[#allocation2 + $0x40] sm:$0xff]
    %v38 = vld [vmem:[#allocation2 + $0x48] sm:$0xff]
    %v39 = vld [vmem:[#allocation2 + $0x50] sm:$0xff]
    %v40 = vld [vmem:[#allocation2 + $0x58] sm:$0xff]
    %v41 = vld [vmem:[#allocation2 + $0x60] sm:$0xff]
    %v42 = vld [vmem:[#allocation2 + $0x68] sm:$0xff]
    %v43 = vld [vmem:[#allocation2 + $0x70] sm:$0xff]
    %v44 = vld [vmem:[#allocation2 + $0x78] sm:$0xff]
    %v45 = vld [vmem:[%s1] sm:$0xff]
    %v46 = vld [vmem:[%s1 + $0x8] sm:$0xff]
    %v47 = vld [vmem:[%s1 + $0x10] sm:$0xff]
    %v48 = vld [vmem:[%s1 + $0x18] sm:$0xff]
    %v50 = vlaneseq
    %v51 = vshrl.u32 %v50, 7
    %v52 = vsub.s32 0, %v51
    %v53 = vrot.slane %v28, %v52
    %55 = vxpose.xlu0.b32.start [1/16] %v29, 128
    %56 = vxpose.xlu0.b32.cont [2/16] %v33, 128
    %57 = vxpose.xlu0.b32.cont [3/16] %v37, 128
    %58 = vxpose.xlu0.b32.cont [4/16] %v41, 128
    %59 = vxpose.xlu0.b32.cont [5/16] 0.0, 128
    %60 = vxpose.xlu0.b32.cont [6/16] 0.0, 128
    %61 = vxpose.xlu0.b32.cont [7/16] 0.0, 128
    %62 = vxpose.xlu0.b32.cont [8/16] 0.0, 128
    %63 = vxpose.xlu0.b32.cont [9/16] 0.0, 128
    %64 = vxpose.xlu0.b32.cont [10/16] 0.0, 128
    %65 = vxpose.xlu0.b32.cont [11/16] 0.0, 128
    %66 = vxpose.xlu0.b32.cont [12/16] 0.0, 128
    %67 = vxpose.xlu0.b32.cont [13/16] 0.0, 128
    %68 = vxpose.xlu0.b32.cont [14/16] 0.0, 128
    %69 = vxpose.xlu0.b32.cont [15/16] 0.0, 128
    %70 = vxpose.xlu0.b32.end [16/16] 0.0, 128
    %v71 = vpop.trf.xlu0
    %v72 = vpop.trf.xlu0
    %v73 = vpop.trf.xlu0
    %v74 = vpop.trf.xlu0
    %v75 = vpop.trf.xlu0
    %v76 = vpop.trf.xlu0
    %v77 = vpop.trf.xlu0
    %v78 = vpop.trf.xlu0
    %v79 = vpop.trf.xlu0
    %v80 = vpop.trf.xlu0
    %v81 = vpop.trf.xlu0
    %v82 = vpop.trf.xlu0
    %v83 = vpop.trf.xlu0
    %v84 = vpop.trf.xlu0
    %v85 = vpop.trf.xlu0
    %v86 = vpop.trf.xlu0
    %87 = vxpose.xlu0.b32.start [1/16] %v30, 128
    %88 = vxpose.xlu0.b32.cont [2/16] %v34, 128
    %89 = vxpose.xlu0.b32.cont [3/16] %v38, 128
    %90 = vxpose.xlu0.b32.cont [4/16] %v42, 128
    %91 = vxpose.xlu0.b32.cont [5/16] 0.0, 128
    %92 = vxpose.xlu0.b32.cont [6/16] 0.0, 128
    %93 = vxpose.xlu0.b32.cont [7/16] 0.0, 128
    %94 = vxpose.xlu0.b32.cont [8/16] 0.0, 128
    %95 = vxpose.xlu0.b32.cont [9/16] 0.0, 128
    %96 = vxpose.xlu0.b32.cont [10/16] 0.0, 128
    %97 = vxpose.xlu0.b32.cont [11/16] 0.0, 128
    %98 = vxpose.xlu0.b32.cont [12/16] 0.0, 128
    %99 = vxpose.xlu0.b32.cont [13/16] 0.0, 128
    %100 = vxpose.xlu0.b32.cont [14/16] 0.0, 128
    %101 = vxpose.xlu0.b32.cont [15/16] 0.0, 128
    %102 = vxpose.xlu0.b32.end [16/16] 0.0, 128
    %v103 = vpop.trf.xlu0
    %v104 = vpop.trf.xlu0
    %v105 = vpop.trf.xlu0
    %v106 = vpop.trf.xlu0
    %v107 = vpop.trf.xlu0
    %v108 = vpop.trf.xlu0
    %v109 = vpop.trf.xlu0
    %v110 = vpop.trf.xlu0
    %v111 = vpop.trf.xlu0
    %v112 = vpop.trf.xlu0
    %v113 = vpop.trf.xlu0
    %v114 = vpop.trf.xlu0
    %v115 = vpop.trf.xlu0
    %v116 = vpop.trf.xlu0
    %v117 = vpop.trf.xlu0
    %v118 = vpop.trf.xlu0
    %119 = vxpose.xlu0.b32.start [1/16] %v31, 128
    %120 = vxpose.xlu0.b32.cont [2/16] %v35, 128
    %121 = vxpose.xlu0.b32.cont [3/16] %v39, 128
    %122 = vxpose.xlu0.b32.cont [4/16] %v43, 128
    %123 = vxpose.xlu0.b32.cont [5/16] 0.0, 128
    %124 = vxpose.xlu0.b32.cont [6/16] 0.0, 128
    %125 = vxpose.xlu0.b32.cont [7/16] 0.0, 128
    %126 = vxpose.xlu0.b32.cont [8/16] 0.0, 128
    %127 = vxpose.xlu0.b32.cont [9/16] 0.0, 128
    %128 = vxpose.xlu0.b32.cont [10/16] 0.0, 128
    %129 = vxpose.xlu0.b32.cont [11/16] 0.0, 128
    %130 = vxpose.xlu0.b32.cont [12/16] 0.0, 128
    %131 = vxpose.xlu0.b32.cont [13/16] 0.0, 128
    %132 = vxpose.xlu0.b32.cont [14/16] 0.0, 128
    %133 = vxpose.xlu0.b32.cont [15/16] 0.0, 128
    %134 = vxpose.xlu0.b32.end [16/16] 0.0, 128
    %v135 = vpop.trf.xlu0
    %v136 = vpop.trf.xlu0
    %v137 = vpop.trf.xlu0
    %v138 = vpop.trf.xlu0
    %v139 = vpop.trf.xlu0
    %v140 = vpop.trf.xlu0
    %v141 = vpop.trf.xlu0
    %v142 = vpop.trf.xlu0
    %v143 = vpop.trf.xlu0
    %v144 = vpop.trf.xlu0
    %v145 = vpop.trf.xlu0
    %v146 = vpop.trf.xlu0
    %v147 = vpop.trf.xlu0
    %v148 = vpop.trf.xlu0
    %v149 = vpop.trf.xlu0
    %v150 = vpop.trf.xlu0
    %151 = vxpose.xlu0.b32.start [1/16] %v32, 128
    %152 = vxpose.xlu0.b32.cont [2/16] %v36, 128
    %153 = vxpose.xlu0.b32.cont [3/16] %v40, 128
    %154 = vxpose.xlu0.b32.cont [4/16] %v44, 128
    %155 = vxpose.xlu0.b32.cont [5/16] 0.0, 128
    %156 = vxpose.xlu0.b32.cont [6/16] 0.0, 128
    %157 = vxpose.xlu0.b32.cont [7/16] 0.0, 128
    %158 = vxpose.xlu0.b32.cont [8/16] 0.0, 128
    %159 = vxpose.xlu0.b32.cont [9/16] 0.0, 128
    %160 = vxpose.xlu0.b32.cont [10/16] 0.0, 128
    %161 = vxpose.xlu0.b32.cont [11/16] 0.0, 128
    %162 = vxpose.xlu0.b32.cont [12/16] 0.0, 128
    %163 = vxpose.xlu0.b32.cont [13/16] 0.0, 128
    %164 = vxpose.xlu0.b32.cont [14/16] 0.0, 128
    %165 = vxpose.xlu0.b32.cont [15/16] 0.0, 128
    %166 = vxpose.xlu0.b32.end [16/16] 0.0, 128
    %v167 = vpop.trf.xlu0
    %v168 = vpop.trf.xlu0
    %v169 = vpop.trf.xlu0
    %v170 = vpop.trf.xlu0
    %v171 = vpop.trf.xlu0
    %v172 = vpop.trf.xlu0
    %v173 = vpop.trf.xlu0
    %v174 = vpop.trf.xlu0
    %v175 = vpop.trf.xlu0
    %v176 = vpop.trf.xlu0
    %v177 = vpop.trf.xlu0
    %v178 = vpop.trf.xlu0
    %v179 = vpop.trf.xlu0
    %v180 = vpop.trf.xlu0
    %v181 = vpop.trf.xlu0
    %v182 = vpop.trf.xlu0
    %vm183 = vcmask 261120
    %v185 = vsel %vm183, %v71, 0
    %v188 = vsel %vm183, %v72, 0
    %v191 = vsel %vm183, %v73, 0
    %v194 = vsel %vm183, %v74, 0
    %v197 = vsel %vm183, %v75, 0
    %v200 = vsel %vm183, %v76, 0
    %v203 = vsel %vm183, %v77, 0
    %v206 = vsel %vm183, %v78, 0
    %v209 = vsel %vm183, %v79, 0
    %v212 = vsel %vm183, %v80, 0
    %v215 = vsel %vm183, %v81, 0
    %v218 = vsel %vm183, %v82, 0
    %v221 = vsel %vm183, %v83, 0
    %v224 = vsel %vm183, %v84, 0
    %v227 = vsel %vm183, %v85, 0
    %v230 = vsel %vm183, %v86, 0
    %v233 = vsel %vm183, %v103, 0
    %v236 = vsel %vm183, %v104, 0
    %v239 = vsel %vm183, %v105, 0
    %v242 = vsel %vm183, %v106, 0
    %v245 = vsel %vm183, %v107, 0
    %v248 = vsel %vm183, %v108, 0
    %v251 = vsel %vm183, %v109, 0
    %v254 = vsel %vm183, %v110, 0
    %v257 = vsel %vm183, %v111, 0
    %v260 = vsel %vm183, %v112, 0
    %v263 = vsel %vm183, %v113, 0
    %v266 = vsel %vm183, %v114, 0
    %v269 = vsel %vm183, %v115, 0
    %v272 = vsel %vm183, %v116, 0
    %v275 = vsel %vm183, %v117, 0
    %v278 = vsel %vm183, %v118, 0
    %v281 = vsel %vm183, %v135, 0
    %v284 = vsel %vm183, %v136, 0
    %v287 = vsel %vm183, %v137, 0
    %v290 = vsel %vm183, %v138, 0
    %v293 = vsel %vm183, %v139, 0
    %v296 = vsel %vm183, %v140, 0
    %v299 = vsel %vm183, %v141, 0
    %v302 = vsel %vm183, %v142, 0
    %v305 = vsel %vm183, %v143, 0
    %v308 = vsel %vm183, %v144, 0
    %v311 = vsel %vm183, %v145, 0
    %v314 = vsel %vm183, %v146, 0
    %v317 = vsel %vm183, %v147, 0
    %v320 = vsel %vm183, %v148, 0
    %v323 = vsel %vm183, %v149, 0
    %v326 = vsel %vm183, %v150, 0
    %v329 = vsel %vm183, %v167, 0
    %v332 = vsel %vm183, %v168, 0
    %334 = vmatprep.subr.mxu0 0.0
    %335 = vmatpush1.msra.mxu0 0.0
    %336 = vmatprep.subr.mxu0 0.0
    %337 = vmatpush1.msra.mxu0 0.0
    %338 = vmatprep.subr.mxu0 0.0
    %339 = vmatpush1.msra.mxu0 0.0
    %340 = vmatprep.subr.mxu0 0.0
    %341 = vmatpush1.msra.mxu0 0.0
    %342 = vmatprep.subr.mxu0 0.0
    %343 = vmatpush1.msra.mxu0 0.0
    %344 = vmatprep.subr.mxu0 0.0
    %345 = vmatpush1.msra.mxu0 0.0
    %346 = vmatprep.subr.mxu0 0.0
    %347 = vmatpush1.msra.mxu0 0.0
    %348 = vmatprep.subr.mxu0 0.0
    %349 = vmatpush1.msra.mxu0 0.0
    %350 = vmatprep.subr.mxu0 0.0
    %351 = vmatpush1.msra.mxu0 0.0
    %352 = vmatprep.subr.mxu0 0.0
    %353 = vmatpush1.msra.mxu0 0.0
    %354 = vmatprep.subr.mxu0 0.0
    %355 = vmatpush1.msra.mxu0 0.0
    %356 = vmatprep.subr.mxu0 0.0
    %357 = vmatpush1.msra.mxu0 0.0
    %358 = vmatprep.subr.mxu0 0.0
    %359 = vmatpush1.msra.mxu0 %v48
    %360 = vmatprep.subr.mxu0 0.0
    %361 = vmatpush1.msra.mxu0 %v47
    %362 = vmatprep.subr.mxu0 0.0
    %363 = vmatpush1.msra.mxu0 %v46
    %364 = vmatprep.subr.mxu0 0.0
    %365 = vmatpush1.msra.mxu0 %v45
    %366 = vmatprep.subr.mxu0 0.0
    %367 = vmatpush2.msra.mxu0 0.0
    %368 = vmatprep.subr.mxu0 0.0
    %369 = vmatpush2.msra.mxu0 0.0
    %370 = vmatprep.subr.mxu0 0.0
    %371 = vmatpush2.msra.mxu0 0.0
    %372 = vmatprep.subr.mxu0 0.0
    %373 = vmatpush2.msra.mxu0 0.0
    %374 = vmatprep.subr.mxu0 0.0
    %375 = vmatpush2.msra.mxu0 0.0
    %376 = vmatprep.subr.mxu0 0.0
    %377 = vmatpush2.msra.mxu0 0.0
    %378 = vmatprep.subr.mxu0 0.0
    %379 = vmatpush2.msra.mxu0 0.0
    %380 = vmatprep.subr.mxu0 0.0
    %381 = vmatpush2.msra.mxu0 0.0
    %382 = vmatprep.subr.mxu0 0.0
    %383 = vmatpush2.msra.mxu0 0.0
    %384 = vmatprep.subr.mxu0 0.0
    %385 = vmatpush2.msra.mxu0 0.0
    %386 = vmatprep.subr.mxu0 0.0
    %387 = vmatpush2.msra.mxu0 0.0
    %388 = vmatprep.subr.mxu0 0.0
    %389 = vmatpush2.msra.mxu0 0.0
    %390 = vmatprep.subr.mxu0 0.0
    %391 = vmatpush2.msra.mxu0 0.0
    %392 = vmatprep.subr.mxu0 0.0
    %393 = vmatpush2.msra.mxu0 0.0
    %394 = vmatprep.subr.mxu0 0.0
    %395 = vmatpush2.msra.mxu0 0.0
    %396 = vmatprep.subr.mxu0 0.0
    %397 = vmatpush2.msra.mxu0 0.0
    %398 = vmatprep.mubr.f32.mxu0 0.0
    %399 = vmatmul.mubr.f32.gmra.mxu0 %v185
    %v400 = vpop.f32.mrf.mxu0
    %v401 = vadd.f32 %v53, %v400
    %v402 = vpop.f32.mrf.mxu0
    %403 = vmatprep.mubr.f32.mxu0 0.0
    %404 = vmatmul.mubr.f32.gmra.mxu0 %v188
    %v405 = vpop.f32.mrf.mxu0
    %v406 = vadd.f32 %v53, %v405
    %v407 = vpop.f32.mrf.mxu0
    %408 = vmatprep.mubr.f32.mxu0 0.0
    %409 = vmatmul.mubr.f32.gmra.mxu0 %v191
    %v410 = vpop.f32.mrf.mxu0
    %v411 = vadd.f32 %v53, %v410
    %v412 = vpop.f32.mrf.mxu0
    %413 = vmatprep.mubr.f32.mxu0 0.0
    %414 = vmatmul.mubr.f32.gmra.mxu0 %v194
    %v415 = vpop.f32.mrf.mxu0
    %v416 = vadd.f32 %v53, %v415
    %v417 = vpop.f32.mrf.mxu0
    %418 = vmatprep.mubr.f32.mxu0 0.0
    %419 = vmatmul.mubr.f32.gmra.mxu0 %v197
    %v420 = vpop.f32.mrf.mxu0
    %v421 = vadd.f32 %v53, %v420
    %v422 = vpop.f32.mrf.mxu0
    %423 = vmatprep.mubr.f32.mxu0 0.0
    %424 = vmatmul.mubr.f32.gmra.mxu0 %v200
    %v425 = vpop.f32.mrf.mxu0
    %v426 = vadd.f32 %v53, %v425
    %v427 = vpop.f32.mrf.mxu0
    %428 = vmatprep.mubr.f32.mxu0 0.0
    %429 = vmatmul.mubr.f32.gmra.mxu0 %v203
    %v430 = vpop.f32.mrf.mxu0
    %v431 = vadd.f32 %v53, %v430
    %v432 = vpop.f32.mrf.mxu0
    %433 = vmatprep.mubr.f32.mxu0 0.0
    %434 = vmatmul.mubr.f32.gmra.mxu0 %v206
    %v435 = vpop.f32.mrf.mxu0
    %v436 = vadd.f32 %v53, %v435
    %v437 = vpop.f32.mrf.mxu0
    %438 = vmatprep.mubr.f32.mxu0 0.0
    %439 = vmatmul.mubr.f32.gmra.mxu0 %v209
    %v440 = vpop.f32.mrf.mxu0
    %v441 = vadd.f32 %v53, %v440
    %v442 = vpop.f32.mrf.mxu0
    %443 = vmatprep.mubr.f32.mxu0 0.0
    %444 = vmatmul.mubr.f32.gmra.mxu0 %v212
    %v445 = vpop.f32.mrf.mxu0
    %v446 = vadd.f32 %v53, %v445
    %v447 = vpop.f32.mrf.mxu0
    %448 = vmatprep.mubr.f32.mxu0 0.0
    %449 = vmatmul.mubr.f32.gmra.mxu0 %v215
    %v450 = vpop.f32.mrf.mxu0
    %v451 = vadd.f32 %v53, %v450
    %v452 = vpop.f32.mrf.mxu0
    %453 = vmatprep.mubr.f32.mxu0 0.0
    %454 = vmatmul.mubr.f32.gmra.mxu0 %v218
    %v455 = vpop.f32.mrf.mxu0
    %v456 = vadd.f32 %v53, %v455
    %v457 = vpop.f32.mrf.mxu0
    %458 = vmatprep.mubr.f32.mxu0 0.0
    %459 = vmatmul.mubr.f32.gmra.mxu0 %v221
    %v460 = vpop.f32.mrf.mxu0
    %v461 = vadd.f32 %v53, %v460
    %v462 = vpop.f32.mrf.mxu0
    %463 = vmatprep.mubr.f32.mxu0 0.0
    %464 = vmatmul.mubr.f32.gmra.mxu0 %v224
    %v465 = vpop.f32.mrf.mxu0
    %v466 = vadd.f32 %v53, %v465
    %v467 = vpop.f32.mrf.mxu0
    %468 = vmatprep.mubr.f32.mxu0 0.0
    %469 = vmatmul.mubr.f32.gmra.mxu0 %v227
    %v470 = vpop.f32.mrf.mxu0
    %v471 = vadd.f32 %v53, %v470
    %v472 = vpop.f32.mrf.mxu0
    %473 = vmatprep.mubr.f32.mxu0 0.0
    %474 = vmatmul.mubr.f32.gmra.mxu0 %v230
    %v475 = vpop.f32.mrf.mxu0
    %v476 = vadd.f32 %v53, %v475
    %v477 = vpop.f32.mrf.mxu0
    %478 = vmatprep.mubr.f32.mxu0 0.0
    %479 = vmatmul.mubr.f32.gmra.mxu0 %v233
    %v480 = vpop.f32.mrf.mxu0
    %v481 = vadd.f32 %v53, %v480
    %v482 = vpop.f32.mrf.mxu0
    %483 = vmatprep.mubr.f32.mxu0 0.0
    %484 = vmatmul.mubr.f32.gmra.mxu0 %v236
    %v485 = vpop.f32.mrf.mxu0
    %v486 = vadd.f32 %v53, %v485
    %v487 = vpop.f32.mrf.mxu0
    %488 = vmatprep.mubr.f32.mxu0 0.0
    %489 = vmatmul.mubr.f32.gmra.mxu0 %v239
    %v490 = vpop.f32.mrf.mxu0
    %v491 = vadd.f32 %v53, %v490
    %v492 = vpop.f32.mrf.mxu0
    %493 = vmatprep.mubr.f32.mxu0 0.0
    %494 = vmatmul.mubr.f32.gmra.mxu0 %v242
    %v495 = vpop.f32.mrf.mxu0
    %v496 = vadd.f32 %v53, %v495
    %v497 = vpop.f32.mrf.mxu0
    %498 = vmatprep.mubr.f32.mxu0 0.0
    %499 = vmatmul.mubr.f32.gmra.mxu0 %v245
    %v500 = vpop.f32.mrf.mxu0
    %v501 = vadd.f32 %v53, %v500
    %v502 = vpop.f32.mrf.mxu0
    %503 = vmatprep.mubr.f32.mxu0 0.0
    %504 = vmatmul.mubr.f32.gmra.mxu0 %v248
    %v505 = vpop.f32.mrf.mxu0
    %v506 = vadd.f32 %v53, %v505
    %v507 = vpop.f32.mrf.mxu0
    %508 = vmatprep.mubr.f32.mxu0 0.0
    %509 = vmatmul.mubr.f32.gmra.mxu0 %v251
    %v510 = vpop.f32.mrf.mxu0
    %v511 = vadd.f32 %v53, %v510
    %v512 = vpop.f32.mrf.mxu0
    %513 = vmatprep.mubr.f32.mxu0 0.0
    %514 = vmatmul.mubr.f32.gmra.mxu0 %v254
    %v515 = vpop.f32.mrf.mxu0
    %v516 = vadd.f32 %v53, %v515
    %v517 = vpop.f32.mrf.mxu0
    %518 = vmatprep.mubr.f32.mxu0 0.0
    %519 = vmatmul.mubr.f32.gmra.mxu0 %v257
    %v520 = vpop.f32.mrf.mxu0
    %v521 = vadd.f32 %v53, %v520
    %v522 = vpop.f32.mrf.mxu0
    %523 = vmatprep.mubr.f32.mxu0 0.0
    %524 = vmatmul.mubr.f32.gmra.mxu0 %v260
    %v525 = vpop.f32.mrf.mxu0
    %v526 = vadd.f32 %v53, %v525
    %v527 = vpop.f32.mrf.mxu0
    %528 = vmatprep.mubr.f32.mxu0 0.0
    %529 = vmatmul.mubr.f32.gmra.mxu0 %v263
    %v530 = vpop.f32.mrf.mxu0
    %v531 = vadd.f32 %v53, %v530
    %v532 = vpop.f32.mrf.mxu0
    %533 = vmatprep.mubr.f32.mxu0 0.0
    %534 = vmatmul.mubr.f32.gmra.mxu0 %v266
    %v535 = vpop.f32.mrf.mxu0
    %v536 = vadd.f32 %v53, %v535
    %v537 = vpop.f32.mrf.mxu0
    %538 = vmatprep.mubr.f32.mxu0 0.0
    %539 = vmatmul.mubr.f32.gmra.mxu0 %v269
    %v540 = vpop.f32.mrf.mxu0
    %v541 = vadd.f32 %v53, %v540
    %v542 = vpop.f32.mrf.mxu0
    %543 = vmatprep.mubr.f32.mxu0 0.0
    %544 = vmatmul.mubr.f32.gmra.mxu0 %v272
    %v545 = vpop.f32.mrf.mxu0
    %v546 = vadd.f32 %v53, %v545
    %v547 = vpop.f32.mrf.mxu0
    %548 = vmatprep.mubr.f32.mxu0 0.0
    %549 = vmatmul.mubr.f32.gmra.mxu0 %v275
    %v550 = vpop.f32.mrf.mxu0
    %v551 = vadd.f32 %v53, %v550
    %v552 = vpop.f32.mrf.mxu0
    %553 = vmatprep.mubr.f32.mxu0 0.0
    %554 = vmatmul.mubr.f32.gmra.mxu0 %v278
    %v555 = vpop.f32.mrf.mxu0
    %v556 = vadd.f32 %v53, %v555
    %v557 = vpop.f32.mrf.mxu0
    %558 = vmatprep.mubr.f32.mxu0 0.0
    %559 = vmatmul.mubr.f32.gmra.mxu0 %v281
    %v560 = vpop.f32.mrf.mxu0
    %v561 = vadd.f32 %v53, %v560
    %v562 = vpop.f32.mrf.mxu0
    %563 = vmatprep.mubr.f32.mxu0 0.0
    %564 = vmatmul.mubr.f32.gmra.mxu0 %v284
    %v565 = vpop.f32.mrf.mxu0
    %v566 = vadd.f32 %v53, %v565
    %v567 = vpop.f32.mrf.mxu0
    %568 = vmatprep.mubr.f32.mxu0 0.0
    %569 = vmatmul.mubr.f32.gmra.mxu0 %v287
    %v570 = vpop.f32.mrf.mxu0
    %v571 = vadd.f32 %v53, %v570
    %v572 = vpop.f32.mrf.mxu0
    %573 = vmatprep.mubr.f32.mxu0 0.0
    %574 = vmatmul.mubr.f32.gmra.mxu0 %v290
    %v575 = vpop.f32.mrf.mxu0
    %v576 = vadd.f32 %v53, %v575
    %v577 = vpop.f32.mrf.mxu0
    %578 = vmatprep.mubr.f32.mxu0 0.0
    %579 = vmatmul.mubr.f32.gmra.mxu0 %v293
    %v580 = vpop.f32.mrf.mxu0
    %v581 = vadd.f32 %v53, %v580
    %v582 = vpop.f32.mrf.mxu0
    %583 = vmatprep.mubr.f32.mxu0 0.0
    %584 = vmatmul.mubr.f32.gmra.mxu0 %v296
    %v585 = vpop.f32.mrf.mxu0
    %v586 = vadd.f32 %v53, %v585
    %v587 = vpop.f32.mrf.mxu0
    %588 = vmatprep.mubr.f32.mxu0 0.0
    %589 = vmatmul.mubr.f32.gmra.mxu0 %v299
    %v590 = vpop.f32.mrf.mxu0
    %v591 = vadd.f32 %v53, %v590
    %v592 = vpop.f32.mrf.mxu0
    %593 = vmatprep.mubr.f32.mxu0 0.0
    %594 = vmatmul.mubr.f32.gmra.mxu0 %v302
    %v595 = vpop.f32.mrf.mxu0
    %v596 = vadd.f32 %v53, %v595
    %v597 = vpop.f32.mrf.mxu0
    %598 = vmatprep.mubr.f32.mxu0 0.0
    %599 = vmatmul.mubr.f32.gmra.mxu0 %v305
    %v600 = vpop.f32.mrf.mxu0
    %v601 = vadd.f32 %v53, %v600
    %v602 = vpop.f32.mrf.mxu0
    %603 = vmatprep.mubr.f32.mxu0 0.0
    %604 = vmatmul.mubr.f32.gmra.mxu0 %v308
    %v605 = vpop.f32.mrf.mxu0
    %v606 = vadd.f32 %v53, %v605
    %v607 = vpop.f32.mrf.mxu0
    %608 = vmatprep.mubr.f32.mxu0 0.0
    %609 = vmatmul.mubr.f32.gmra.mxu0 %v311
    %v610 = vpop.f32.mrf.mxu0
    %v611 = vadd.f32 %v53, %v610
    %v612 = vpop.f32.mrf.mxu0
    %613 = vmatprep.mubr.f32.mxu0 0.0
    %614 = vmatmul.mubr.f32.gmra.mxu0 %v314
    %v615 = vpop.f32.mrf.mxu0
    %v616 = vadd.f32 %v53, %v615
    %v617 = vpop.f32.mrf.mxu0
    %618 = vmatprep.mubr.f32.mxu0 0.0
    %619 = vmatmul.mubr.f32.gmra.mxu0 %v317
    %v620 = vpop.f32.mrf.mxu0
    %v621 = vadd.f32 %v53, %v620
    %v622 = vpop.f32.mrf.mxu0
    %623 = vmatprep.mubr.f32.mxu0 0.0
    %624 = vmatmul.mubr.f32.gmra.mxu0 %v320
    %v625 = vpop.f32.mrf.mxu0
    %v626 = vadd.f32 %v53, %v625
    %v627 = vpop.f32.mrf.mxu0
    %628 = vmatprep.mubr.f32.mxu0 0.0
    %629 = vmatmul.mubr.f32.gmra.mxu0 %v323
    %v630 = vpop.f32.mrf.mxu0
    %v631 = vadd.f32 %v53, %v630
    %v632 = vpop.f32.mrf.mxu0
    %633 = vmatprep.mubr.f32.mxu0 0.0
    %634 = vmatmul.mubr.f32.gmra.mxu0 %v326
    %v635 = vpop.f32.mrf.mxu0
    %v636 = vadd.f32 %v53, %v635
    %v637 = vpop.f32.mrf.mxu0
    %638 = vmatprep.mubr.f32.mxu0 0.0
    %639 = vmatmul.mubr.f32.gmra.mxu0 %v329
    %v640 = vpop.f32.mrf.mxu0
    %v641 = vadd.f32 %v53, %v640
    %v642 = vpop.f32.mrf.mxu0
    %643 = vmatprep.mubr.f32.mxu0 0.0
    %644 = vmatmul.mubr.f32.gmra.mxu0 %v332
    %v645 = vpop.f32.mrf.mxu0
    %v646 = vadd.f32 %v53, %v645
    %v647 = vpop.f32.mrf.mxu0
    %648 = vdwg.mxu0
    %vm649 = vcmask 97280
    %650 = vst.msk [vmem:[%s3] sm:$0xff] %vm649, %v401
    %651 = vst.msk [vmem:[%s3 + $0x8] sm:$0xff] %vm649, %v406
    %652 = vst.msk [vmem:[%s3 + $0x10] sm:$0xff] %vm649, %v411
    %653 = vst.msk [vmem:[%s3 + $0x18] sm:$0xff] %vm649, %v416
    %654 = vst.msk [vmem:[%s3 + $0x20] sm:$0xff] %vm649, %v421
    %655 = vst.msk [vmem:[%s3 + $0x28] sm:$0xff] %vm649, %v426
    %656 = vst.msk [vmem:[%s3 + $0x30] sm:$0xff] %vm649, %v431
    %657 = vst.msk [vmem:[%s3 + $0x38] sm:$0xff] %vm649, %v436
    %658 = vst.msk [vmem:[%s3 + $0x40] sm:$0xff] %vm649, %v441
    %659 = vst.msk [vmem:[%s3 + $0x48] sm:$0xff] %vm649, %v446
    %660 = vst.msk [vmem:[%s3 + $0x50] sm:$0xff] %vm649, %v451
    %661 = vst.msk [vmem:[%s3 + $0x58] sm:$0xff] %vm649, %v456
    %662 = vst.msk [vmem:[%s3 + $0x60] sm:$0xff] %vm649, %v461
    %663 = vst.msk [vmem:[%s3 + $0x68] sm:$0xff] %vm649, %v466
    %664 = vst.msk [vmem:[%s3 + $0x70] sm:$0xff] %vm649, %v471
    %665 = vst.msk [vmem:[%s3 + $0x78] sm:$0xff] %vm649, %v476
    %666 = vst.msk [vmem:[%s3 + $0x80] sm:$0xff] %vm649, %v481
    %667 = vst.msk [vmem:[%s3 + $0x88] sm:$0xff] %vm649, %v486
    %668 = vst.msk [vmem:[%s3 + $0x90] sm:$0xff] %vm649, %v491
    %669 = vst.msk [vmem:[%s3 + $0x98] sm:$0xff] %vm649, %v496
    %670 = vst.msk [vmem:[%s3 + $0xa0] sm:$0xff] %vm649, %v501
    %671 = vst.msk [vmem:[%s3 + $0xa8] sm:$0xff] %vm649, %v506
    %672 = vst.msk [vmem:[%s3 + $0xb0] sm:$0xff] %vm649, %v511
    %673 = vst.msk [vmem:[%s3 + $0xb8] sm:$0xff] %vm649, %v516
    %674 = vst.msk [vmem:[%s3 + $0xc0] sm:$0xff] %vm649, %v521
    %675 = vst.msk [vmem:[%s3 + $0xc8] sm:$0xff] %vm649, %v526
    %676 = vst.msk [vmem:[%s3 + $0xd0] sm:$0xff] %vm649, %v531
    %677 = vst.msk [vmem:[%s3 + $0xd8] sm:$0xff] %vm649, %v536
    %678 = vst.msk [vmem:[%s3 + $0xe0] sm:$0xff] %vm649, %v541
    %679 = vst.msk [vmem:[%s3 + $0xe8] sm:$0xff] %vm649, %v546
    %680 = vst.msk [vmem:[%s3 + $0xf0] sm:$0xff] %vm649, %v551
    %681 = vst.msk [vmem:[%s3 + $0xf8] sm:$0xff] %vm649, %v556
    %682 = vst.msk [vmem:[%s3 + $0x100] sm:$0xff] %vm649, %v561
    %683 = vst.msk [vmem:[%s3 + $0x108] sm:$0xff] %vm649, %v566
    %684 = vst.msk [vmem:[%s3 + $0x110] sm:$0xff] %vm649, %v571
    %685 = vst.msk [vmem:[%s3 + $0x118] sm:$0xff] %vm649, %v576
    %686 = vst.msk [vmem:[%s3 + $0x120] sm:$0xff] %vm649, %v581
    %687 = vst.msk [vmem:[%s3 + $0x128] sm:$0xff] %vm649, %v586
    %688 = vst.msk [vmem:[%s3 + $0x130] sm:$0xff] %vm649, %v591
    %689 = vst.msk [vmem:[%s3 + $0x138] sm:$0xff] %vm649, %v596
    %690 = vst.msk [vmem:[%s3 + $0x140] sm:$0xff] %vm649, %v601
    %691 = vst.msk [vmem:[%s3 + $0x148] sm:$0xff] %vm649, %v606
    %692 = vst.msk [vmem:[%s3 + $0x150] sm:$0xff] %vm649, %v611
    %693 = vst.msk [vmem:[%s3 + $0x158] sm:$0xff] %vm649, %v616
    %694 = vst.msk [vmem:[%s3 + $0x160] sm:$0xff] %vm649, %v621
    %695 = vst.msk [vmem:[%s3 + $0x168] sm:$0xff] %vm649, %v626
    %696 = vst.msk [vmem:[%s3 + $0x170] sm:$0xff] %vm649, %v631
    %697 = vst.msk [vmem:[%s3 + $0x178] sm:$0xff] %vm649, %v636
    %698 = vst.msk [vmem:[%s3 + $0x180] sm:$0xff] %vm649, %v641
    %699 = vst.msk [vmem:[%s3 + $0x188] sm:$0xff] %vm649, %v646
    %s700 = scalar_lea.vmem [#allocation2], 128
    %v701 = vld [vmem:[%s700] sm:$0xff]
    %v702 = vld [vmem:[%s700 + $0x8] sm:$0xff]
    %v703 = vld [vmem:[%s700 + $0x10] sm:$0xff]
    %v704 = vld [vmem:[%s700 + $0x18] sm:$0xff]
    %v705 = vld [vmem:[%s700 + $0x20] sm:$0xff]
    %v706 = vld [vmem:[%s700 + $0x28] sm:$0xff]
    %v707 = vld [vmem:[%s700 + $0x30] sm:$0xff]
    %v708 = vld [vmem:[%s700 + $0x38] sm:$0xff]
    %v709 = vld [vmem:[%s700 + $0x40] sm:$0xff]
    %v710 = vld [vmem:[%s700 + $0x48] sm:$0xff]
    %v711 = vld [vmem:[%s700 + $0x50] sm:$0xff]
    %v712 = vld [vmem:[%s700 + $0x58] sm:$0xff]
    %v713 = vld [vmem:[%s700 + $0x60] sm:$0xff]
    %v714 = vld [vmem:[%s700 + $0x68] sm:$0xff]
    %v715 = vld [vmem:[%s700 + $0x70] sm:$0xff]
    %v716 = vld [vmem:[%s700 + $0x78] sm:$0xff]
    %v717 = vld [vmem:[%s1] sm:$0xff]
    %v718 = vld [vmem:[%s1 + $0x8] sm:$0xff]
    %v719 = vld [vmem:[%s1 + $0x10] sm:$0xff]
    %v720 = vld [vmem:[%s1 + $0x18] sm:$0xff]
    %721 = vxpose.xlu0.b32.start [1/16] %v701, 128
    %722 = vxpose.xlu0.b32.cont [2/16] %v705, 128
    %723 = vxpose.xlu0.b32.cont [3/16] %v709, 128
    %724 = vxpose.xlu0.b32.cont [4/16] %v713, 128
    %725 = vxpose.xlu0.b32.cont [5/16] 0.0, 128
    %726 = vxpose.xlu0.b32.cont [6/16] 0.0, 128
    %727 = vxpose.xlu0.b32.cont [7/16] 0.0, 128
    %728 = vxpose.xlu0.b32.cont [8/16] 0.0, 128
    %729 = vxpose.xlu0.b32.cont [9/16] 0.0, 128
    %730 = vxpose.xlu0.b32.cont [10/16] 0.0, 128
    %731 = vxpose.xlu0.b32.cont [11/16] 0.0, 128
    %732 = vxpose.xlu0.b32.cont [12/16] 0.0, 128
    %733 = vxpose.xlu0.b32.cont [13/16] 0.0, 128
    %734 = vxpose.xlu0.b32.cont [14/16] 0.0, 128
    %735 = vxpose.xlu0.b32.cont [15/16] 0.0, 128
    %736 = vxpose.xlu0.b32.end [16/16] 0.0, 128
    %v737 = vpop.trf.xlu0
    %v738 = vpop.trf.xlu0
    %v739 = vpop.trf.xlu0
    %v740 = vpop.trf.xlu0
    %v741 = vpop.trf.xlu0
    %v742 = vpop.trf.xlu0
    %v743 = vpop.trf.xlu0
    %v744 = vpop.trf.xlu0
    %v745 = vpop.trf.xlu0
    %v746 = vpop.trf.xlu0
    %v747 = vpop.trf.xlu0
    %v748 = vpop.trf.xlu0
    %v749 = vpop.trf.xlu0
    %v750 = vpop.trf.xlu0
    %v751 = vpop.trf.xlu0
    %v752 = vpop.trf.xlu0
    %753 = vxpose.xlu0.b32.start [1/16] %v702, 128
    %754 = vxpose.xlu0.b32.cont [2/16] %v706, 128
    %755 = vxpose.xlu0.b32.cont [3/16] %v710, 128
    %756 = vxpose.xlu0.b32.cont [4/16] %v714, 128
    %757 = vxpose.xlu0.b32.cont [5/16] 0.0, 128
    %758 = vxpose.xlu0.b32.cont [6/16] 0.0, 128
    %759 = vxpose.xlu0.b32.cont [7/16] 0.0, 128
    %760 = vxpose.xlu0.b32.cont [8/16] 0.0, 128
    %761 = vxpose.xlu0.b32.cont [9/16] 0.0, 128
    %762 = vxpose.xlu0.b32.cont [10/16] 0.0, 128
    %763 = vxpose.xlu0.b32.cont [11/16] 0.0, 128
    %764 = vxpose.xlu0.b32.cont [12/16] 0.0, 128
    %765 = vxpose.xlu0.b32.cont [13/16] 0.0, 128
    %766 = vxpose.xlu0.b32.cont [14/16] 0.0, 128
    %767 = vxpose.xlu0.b32.cont [15/16] 0.0, 128
    %768 = vxpose.xlu0.b32.end [16/16] 0.0, 128
    %v769 = vpop.trf.xlu0
    %v770 = vpop.trf.xlu0
    %v771 = vpop.trf.xlu0
    %v772 = vpop.trf.xlu0
    %v773 = vpop.trf.xlu0
    %v774 = vpop.trf.xlu0
    %v775 = vpop.trf.xlu0
    %v776 = vpop.trf.xlu0
    %v777 = vpop.trf.xlu0
    %v778 = vpop.trf.xlu0
    %v779 = vpop.trf.xlu0
    %v780 = vpop.trf.xlu0
    %v781 = vpop.trf.xlu0
    %v782 = vpop.trf.xlu0
    %v783 = vpop.trf.xlu0
    %v784 = vpop.trf.xlu0
    %785 = vxpose.xlu0.b32.start [1/16] %v703, 128
    %786 = vxpose.xlu0.b32.cont [2/16] %v707, 128
    %787 = vxpose.xlu0.b32.cont [3/16] %v711, 128
    %788 = vxpose.xlu0.b32.cont [4/16] %v715, 128
    %789 = vxpose.xlu0.b32.cont [5/16] 0.0, 128
    %790 = vxpose.xlu0.b32.cont [6/16] 0.0, 128
    %791 = vxpose.xlu0.b32.cont [7/16] 0.0, 128
    %792 = vxpose.xlu0.b32.cont [8/16] 0.0, 128
    %793 = vxpose.xlu0.b32.cont [9/16] 0.0, 128
    %794 = vxpose.xlu0.b32.cont [10/16] 0.0, 128
    %795 = vxpose.xlu0.b32.cont [11/16] 0.0, 128
    %796 = vxpose.xlu0.b32.cont [12/16] 0.0, 128
    %797 = vxpose.xlu0.b32.cont [13/16] 0.0, 128
    %798 = vxpose.xlu0.b32.cont [14/16] 0.0, 128
    %799 = vxpose.xlu0.b32.cont [15/16] 0.0, 128
    %800 = vxpose.xlu0.b32.end [16/16] 0.0, 128
    %v801 = vpop.trf.xlu0
    %v802 = vpop.trf.xlu0
    %v803 = vpop.trf.xlu0
    %v804 = vpop.trf.xlu0
    %v805 = vpop.trf.xlu0
    %v806 = vpop.trf.xlu0
    %v807 = vpop.trf.xlu0
    %v808 = vpop.trf.xlu0
    %v809 = vpop.trf.xlu0
    %v810 = vpop.trf.xlu0
    %v811 = vpop.trf.xlu0
    %v812 = vpop.trf.xlu0
    %v813 = vpop.trf.xlu0
    %v814 = vpop.trf.xlu0
    %v815 = vpop.trf.xlu0
    %v816 = vpop.trf.xlu0
    %817 = vxpose.xlu0.b32.start [1/16] %v704, 128
    %818 = vxpose.xlu0.b32.cont [2/16] %v708, 128
    %819 = vxpose.xlu0.b32.cont [3/16] %v712, 128
    %820 = vxpose.xlu0.b32.cont [4/16] %v716, 128
    %821 = vxpose.xlu0.b32.cont [5/16] 0.0, 128
    %822 = vxpose.xlu0.b32.cont [6/16] 0.0, 128
    %823 = vxpose.xlu0.b32.cont [7/16] 0.0, 128
    %824 = vxpose.xlu0.b32.cont [8/16] 0.0, 128
    %825 = vxpose.xlu0.b32.cont [9/16] 0.0, 128
    %826 = vxpose.xlu0.b32.cont [10/16] 0.0, 128
    %827 = vxpose.xlu0.b32.cont [11/16] 0.0, 128
    %828 = vxpose.xlu0.b32.cont [12/16] 0.0, 128
    %829 = vxpose.xlu0.b32.cont [13/16] 0.0, 128
    %830 = vxpose.xlu0.b32.cont [14/16] 0.0, 128
    %831 = vxpose.xlu0.b32.cont [15/16] 0.0, 128
    %832 = vxpose.xlu0.b32.end [16/16] 0.0, 128
    %v833 = vpop.trf.xlu0
    %v834 = vpop.trf.xlu0
    %v835 = vpop.trf.xlu0
    %v836 = vpop.trf.xlu0
    %v837 = vpop.trf.xlu0
    %v838 = vpop.trf.xlu0
    %v839 = vpop.trf.xlu0
    %v840 = vpop.trf.xlu0
    %v841 = vpop.trf.xlu0
    %v842 = vpop.trf.xlu0
    %v843 = vpop.trf.xlu0
    %v844 = vpop.trf.xlu0
    %v845 = vpop.trf.xlu0
    %v846 = vpop.trf.xlu0
    %v847 = vpop.trf.xlu0
    %v848 = vpop.trf.xlu0
    %v850 = vsel %vm183, %v737, 0
    %v853 = vsel %vm183, %v738, 0
    %v856 = vsel %vm183, %v739, 0
    %v859 = vsel %vm183, %v740, 0
    %v862 = vsel %vm183, %v741, 0
    %v865 = vsel %vm183, %v742, 0
    %v868 = vsel %vm183, %v743, 0
    %v871 = vsel %vm183, %v744, 0
    %v874 = vsel %vm183, %v745, 0
    %v877 = vsel %vm183, %v746, 0
    %v880 = vsel %vm183, %v747, 0
    %v883 = vsel %vm183, %v748, 0
    %v886 = vsel %vm183, %v749, 0
    %v889 = vsel %vm183, %v750, 0
    %v892 = vsel %vm183, %v751, 0
    %v895 = vsel %vm183, %v752, 0
    %v898 = vsel %vm183, %v769, 0
    %v901 = vsel %vm183, %v770, 0
    %v904 = vsel %vm183, %v771, 0
    %v907 = vsel %vm183, %v772, 0
    %v910 = vsel %vm183, %v773, 0
    %v913 = vsel %vm183, %v774, 0
    %v916 = vsel %vm183, %v775, 0
    %v919 = vsel %vm183, %v776, 0
    %v922 = vsel %vm183, %v777, 0
    %v925 = vsel %vm183, %v778, 0
    %v928 = vsel %vm183, %v779, 0
    %v931 = vsel %vm183, %v780, 0
    %v934 = vsel %vm183, %v781, 0
    %v937 = vsel %vm183, %v782, 0
    %v940 = vsel %vm183, %v783, 0
    %v943 = vsel %vm183, %v784, 0
    %v946 = vsel %vm183, %v801, 0
    %v949 = vsel %vm183, %v802, 0
    %v952 = vsel %vm183, %v803, 0
    %v955 = vsel %vm183, %v804, 0
    %v958 = vsel %vm183, %v805, 0
    %v961 = vsel %vm183, %v806, 0
    %v964 = vsel %vm183, %v807, 0
    %v967 = vsel %vm183, %v808, 0
    %v970 = vsel %vm183, %v809, 0
    %v973 = vsel %vm183, %v810, 0
    %v976 = vsel %vm183, %v811, 0
    %v979 = vsel %vm183, %v812, 0
    %v982 = vsel %vm183, %v813, 0
    %v985 = vsel %vm183, %v814, 0
    %v988 = vsel %vm183, %v815, 0
    %v991 = vsel %vm183, %v816, 0
    %v994 = vsel %vm183, %v833, 0
    %v997 = vsel %vm183, %v834, 0
    %999 = vmatprep.subr.mxu0 0.0
    %1000 = vmatpush1.msra.mxu0 0.0
    %1001 = vmatprep.subr.mxu0 0.0
    %1002 = vmatpush1.msra.mxu0 0.0
    %1003 = vmatprep.subr.mxu0 0.0
    %1004 = vmatpush1.msra.mxu0 0.0
    %1005 = vmatprep.subr.mxu0 0.0
    %1006 = vmatpush1.msra.mxu0 0.0
    %1007 = vmatprep.subr.mxu0 0.0
    %1008 = vmatpush1.msra.mxu0 0.0
    %1009 = vmatprep.subr.mxu0 0.0
    %1010 = vmatpush1.msra.mxu0 0.0
    %1011 = vmatprep.subr.mxu0 0.0
    %1012 = vmatpush1.msra.mxu0 0.0
    %1013 = vmatprep.subr.mxu0 0.0
    %1014 = vmatpush1.msra.mxu0 0.0
    %1015 = vmatprep.subr.mxu0 0.0
    %1016 = vmatpush1.msra.mxu0 0.0
    %1017 = vmatprep.subr.mxu0 0.0
    %1018 = vmatpush1.msra.mxu0 0.0
    %1019 = vmatprep.subr.mxu0 0.0
    %1020 = vmatpush1.msra.mxu0 0.0
    %1021 = vmatprep.subr.mxu0 0.0
    %1022 = vmatpush1.msra.mxu0 0.0
    %1023 = vmatprep.subr.mxu0 0.0
    %1024 = vmatpush1.msra.mxu0 %v720
    %1025 = vmatprep.subr.mxu0 0.0
    %1026 = vmatpush1.msra.mxu0 %v719
    %1027 = vmatprep.subr.mxu0 0.0
    %1028 = vmatpush1.msra.mxu0 %v718
    %1029 = vmatprep.subr.mxu0 0.0
    %1030 = vmatpush1.msra.mxu0 %v717
    %1031 = vmatprep.subr.mxu0 0.0
    %1032 = vmatpush2.msra.mxu0 0.0
    %1033 = vmatprep.subr.mxu0 0.0
    %1034 = vmatpush2.msra.mxu0 0.0
    %1035 = vmatprep.subr.mxu0 0.0
    %1036 = vmatpush2.msra.mxu0 0.0
    %1037 = vmatprep.subr.mxu0 0.0
    %1038 = vmatpush2.msra.mxu0 0.0
    %1039 = vmatprep.subr.mxu0 0.0
    %1040 = vmatpush2.msra.mxu0 0.0
    %1041 = vmatprep.subr.mxu0 0.0
    %1042 = vmatpush2.msra.mxu0 0.0
    %1043 = vmatprep.subr.mxu0 0.0
    %1044 = vmatpush2.msra.mxu0 0.0
    %1045 = vmatprep.subr.mxu0 0.0
    %1046 = vmatpush2.msra.mxu0 0.0
    %1047 = vmatprep.subr.mxu0 0.0
    %1048 = vmatpush2.msra.mxu0 0.0
    %1049 = vmatprep.subr.mxu0 0.0
    %1050 = vmatpush2.msra.mxu0 0.0
    %1051 = vmatprep.subr.mxu0 0.0
    %1052 = vmatpush2.msra.mxu0 0.0
    %1053 = vmatprep.subr.mxu0 0.0
    %1054 = vmatpush2.msra.mxu0 0.0
    %1055 = vmatprep.subr.mxu0 0.0
    %1056 = vmatpush2.msra.mxu0 0.0
    %1057 = vmatprep.subr.mxu0 0.0
    %1058 = vmatpush2.msra.mxu0 0.0
    %1059 = vmatprep.subr.mxu0 0.0
    %1060 = vmatpush2.msra.mxu0 0.0
    %1061 = vmatprep.subr.mxu0 0.0
    %1062 = vmatpush2.msra.mxu0 0.0
    %1063 = vmatprep.mubr.f32.mxu0 0.0
    %1064 = vmatmul.mubr.f32.gmra.mxu0 %v850
    %v1065 = vpop.f32.mrf.mxu0
    %v1066 = vadd.f32 %v53, %v1065
    %v1067 = vpop.f32.mrf.mxu0
    %1068 = vmatprep.mubr.f32.mxu0 0.0
    %1069 = vmatmul.mubr.f32.gmra.mxu0 %v853
    %v1070 = vpop.f32.mrf.mxu0
    %v1071 = vadd.f32 %v53, %v1070
    %v1072 = vpop.f32.mrf.mxu0
    %1073 = vmatprep.mubr.f32.mxu0 0.0
    %1074 = vmatmul.mubr.f32.gmra.mxu0 %v856
    %v1075 = vpop.f32.mrf.mxu0
    %v1076 = vadd.f32 %v53, %v1075
    %v1077 = vpop.f32.mrf.mxu0
    %1078 = vmatprep.mubr.f32.mxu0 0.0
    %1079 = vmatmul.mubr.f32.gmra.mxu0 %v859
    %v1080 = vpop.f32.mrf.mxu0
    %v1081 = vadd.f32 %v53, %v1080
    %v1082 = vpop.f32.mrf.mxu0
    %1083 = vmatprep.mubr.f32.mxu0 0.0
    %1084 = vmatmul.mubr.f32.gmra.mxu0 %v862
    %v1085 = vpop.f32.mrf.mxu0
    %v1086 = vadd.f32 %v53, %v1085
    %v1087 = vpop.f32.mrf.mxu0
    %1088 = vmatprep.mubr.f32.mxu0 0.0
    %1089 = vmatmul.mubr.f32.gmra.mxu0 %v865
    %v1090 = vpop.f32.mrf.mxu0
    %v1091 = vadd.f32 %v53, %v1090
    %v1092 = vpop.f32.mrf.mxu0
    %1093 = vmatprep.mubr.f32.mxu0 0.0
    %1094 = vmatmul.mubr.f32.gmra.mxu0 %v868
    %v1095 = vpop.f32.mrf.mxu0
    %v1096 = vadd.f32 %v53, %v1095
    %v1097 = vpop.f32.mrf.mxu0
    %1098 = vmatprep.mubr.f32.mxu0 0.0
    %1099 = vmatmul.mubr.f32.gmra.mxu0 %v871
    %v1100 = vpop.f32.mrf.mxu0
    %v1101 = vadd.f32 %v53, %v1100
    %v1102 = vpop.f32.mrf.mxu0
    %1103 = vmatprep.mubr.f32.mxu0 0.0
    %1104 = vmatmul.mubr.f32.gmra.mxu0 %v874
    %v1105 = vpop.f32.mrf.mxu0
    %v1106 = vadd.f32 %v53, %v1105
    %v1107 = vpop.f32.mrf.mxu0
    %1108 = vmatprep.mubr.f32.mxu0 0.0
    %1109 = vmatmul.mubr.f32.gmra.mxu0 %v877
    %v1110 = vpop.f32.mrf.mxu0
    %v1111 = vadd.f32 %v53, %v1110
    %v1112 = vpop.f32.mrf.mxu0
    %1113 = vmatprep.mubr.f32.mxu0 0.0
    %1114 = vmatmul.mubr.f32.gmra.mxu0 %v880
    %v1115 = vpop.f32.mrf.mxu0
    %v1116 = vadd.f32 %v53, %v1115
    %v1117 = vpop.f32.mrf.mxu0
    %1118 = vmatprep.mubr.f32.mxu0 0.0
    %1119 = vmatmul.mubr.f32.gmra.mxu0 %v883
    %v1120 = vpop.f32.mrf.mxu0
    %v1121 = vadd.f32 %v53, %v1120
    %v1122 = vpop.f32.mrf.mxu0
    %1123 = vmatprep.mubr.f32.mxu0 0.0
    %1124 = vmatmul.mubr.f32.gmra.mxu0 %v886
    %v1125 = vpop.f32.mrf.mxu0
    %v1126 = vadd.f32 %v53, %v1125
    %v1127 = vpop.f32.mrf.mxu0
    %1128 = vmatprep.mubr.f32.mxu0 0.0
    %1129 = vmatmul.mubr.f32.gmra.mxu0 %v889
    %v1130 = vpop.f32.mrf.mxu0
    %v1131 = vadd.f32 %v53, %v1130
    %v1132 = vpop.f32.mrf.mxu0
    %1133 = vmatprep.mubr.f32.mxu0 0.0
    %1134 = vmatmul.mubr.f32.gmra.mxu0 %v892
    %v1135 = vpop.f32.mrf.mxu0
    %v1136 = vadd.f32 %v53, %v1135
    %v1137 = vpop.f32.mrf.mxu0
    %1138 = vmatprep.mubr.f32.mxu0 0.0
    %1139 = vmatmul.mubr.f32.gmra.mxu0 %v895
    %v1140 = vpop.f32.mrf.mxu0
    %v1141 = vadd.f32 %v53, %v1140
    %v1142 = vpop.f32.mrf.mxu0
    %1143 = vmatprep.mubr.f32.mxu0 0.0
    %1144 = vmatmul.mubr.f32.gmra.mxu0 %v898
    %v1145 = vpop.f32.mrf.mxu0
    %v1146 = vadd.f32 %v53, %v1145
    %v1147 = vpop.f32.mrf.mxu0
    %1148 = vmatprep.mubr.f32.mxu0 0.0
    %1149 = vmatmul.mubr.f32.gmra.mxu0 %v901
    %v1150 = vpop.f32.mrf.mxu0
    %v1151 = vadd.f32 %v53, %v1150
    %v1152 = vpop.f32.mrf.mxu0
    %1153 = vmatprep.mubr.f32.mxu0 0.0
    %1154 = vmatmul.mubr.f32.gmra.mxu0 %v904
    %v1155 = vpop.f32.mrf.mxu0
    %v1156 = vadd.f32 %v53, %v1155
    %v1157 = vpop.f32.mrf.mxu0
    %1158 = vmatprep.mubr.f32.mxu0 0.0
    %1159 = vmatmul.mubr.f32.gmra.mxu0 %v907
    %v1160 = vpop.f32.mrf.mxu0
    %v1161 = vadd.f32 %v53, %v1160
    %v1162 = vpop.f32.mrf.mxu0
    %1163 = vmatprep.mubr.f32.mxu0 0.0
    %1164 = vmatmul.mubr.f32.gmra.mxu0 %v910
    %v1165 = vpop.f32.mrf.mxu0
    %v1166 = vadd.f32 %v53, %v1165
    %v1167 = vpop.f32.mrf.mxu0
    %1168 = vmatprep.mubr.f32.mxu0 0.0
    %1169 = vmatmul.mubr.f32.gmra.mxu0 %v913
    %v1170 = vpop.f32.mrf.mxu0
    %v1171 = vadd.f32 %v53, %v1170
    %v1172 = vpop.f32.mrf.mxu0
    %1173 = vmatprep.mubr.f32.mxu0 0.0
    %1174 = vmatmul.mubr.f32.gmra.mxu0 %v916
    %v1175 = vpop.f32.mrf.mxu0
    %v1176 = vadd.f32 %v53, %v1175
    %v1177 = vpop.f32.mrf.mxu0
    %1178 = vmatprep.mubr.f32.mxu0 0.0
    %1179 = vmatmul.mubr.f32.gmra.mxu0 %v919
    %v1180 = vpop.f32.mrf.mxu0
    %v1181 = vadd.f32 %v53, %v1180
    %v1182 = vpop.f32.mrf.mxu0
    %1183 = vmatprep.mubr.f32.mxu0 0.0
    %1184 = vmatmul.mubr.f32.gmra.mxu0 %v922
    %v1185 = vpop.f32.mrf.mxu0
    %v1186 = vadd.f32 %v53, %v1185
    %v1187 = vpop.f32.mrf.mxu0
    %1188 = vmatprep.mubr.f32.mxu0 0.0
    %1189 = vmatmul.mubr.f32.gmra.mxu0 %v925
    %v1190 = vpop.f32.mrf.mxu0
    %v1191 = vadd.f32 %v53, %v1190
    %v1192 = vpop.f32.mrf.mxu0
    %1193 = vmatprep.mubr.f32.mxu0 0.0
    %1194 = vmatmul.mubr.f32.gmra.mxu0 %v928
    %v1195 = vpop.f32.mrf.mxu0
    %v1196 = vadd.f32 %v53, %v1195
    %v1197 = vpop.f32.mrf.mxu0
    %1198 = vmatprep.mubr.f32.mxu0 0.0
    %1199 = vmatmul.mubr.f32.gmra.mxu0 %v931
    %v1200 = vpop.f32.mrf.mxu0
    %v1201 = vadd.f32 %v53, %v1200
    %v1202 = vpop.f32.mrf.mxu0
    %1203 = vmatprep.mubr.f32.mxu0 0.0
    %1204 = vmatmul.mubr.f32.gmra.mxu0 %v934
    %v1205 = vpop.f32.mrf.mxu0
    %v1206 = vadd.f32 %v53, %v1205
    %v1207 = vpop.f32.mrf.mxu0
    %1208 = vmatprep.mubr.f32.mxu0 0.0
    %1209 = vmatmul.mubr.f32.gmra.mxu0 %v937
    %v1210 = vpop.f32.mrf.mxu0
    %v1211 = vadd.f32 %v53, %v1210
    %v1212 = vpop.f32.mrf.mxu0
    %1213 = vmatprep.mubr.f32.mxu0 0.0
    %1214 = vmatmul.mubr.f32.gmra.mxu0 %v940
    %v1215 = vpop.f32.mrf.mxu0
    %v1216 = vadd.f32 %v53, %v1215
    %v1217 = vpop.f32.mrf.mxu0
    %1218 = vmatprep.mubr.f32.mxu0 0.0
    %1219 = vmatmul.mubr.f32.gmra.mxu0 %v943
    %v1220 = vpop.f32.mrf.mxu0
    %v1221 = vadd.f32 %v53, %v1220
    %v1222 = vpop.f32.mrf.mxu0
    %1223 = vmatprep.mubr.f32.mxu0 0.0
    %1224 = vmatmul.mubr.f32.gmra.mxu0 %v946
    %v1225 = vpop.f32.mrf.mxu0
    %v1226 = vadd.f32 %v53, %v1225
    %v1227 = vpop.f32.mrf.mxu0
    %1228 = vmatprep.mubr.f32.mxu0 0.0
    %1229 = vmatmul.mubr.f32.gmra.mxu0 %v949
    %v1230 = vpop.f32.mrf.mxu0
    %v1231 = vadd.f32 %v53, %v1230
    %v1232 = vpop.f32.mrf.mxu0
    %1233 = vmatprep.mubr.f32.mxu0 0.0
    %1234 = vmatmul.mubr.f32.gmra.mxu0 %v952
    %v1235 = vpop.f32.mrf.mxu0
    %v1236 = vadd.f32 %v53, %v1235
    %v1237 = vpop.f32.mrf.mxu0
    %1238 = vmatprep.mubr.f32.mxu0 0.0
    %1239 = vmatmul.mubr.f32.gmra.mxu0 %v955
    %v1240 = vpop.f32.mrf.mxu0
    %v1241 = vadd.f32 %v53, %v1240
    %v1242 = vpop.f32.mrf.mxu0
    %1243 = vmatprep.mubr.f32.mxu0 0.0
    %1244 = vmatmul.mubr.f32.gmra.mxu0 %v958
    %v1245 = vpop.f32.mrf.mxu0
    %v1246 = vadd.f32 %v53, %v1245
    %v1247 = vpop.f32.mrf.mxu0
    %1248 = vmatprep.mubr.f32.mxu0 0.0
    %1249 = vmatmul.mubr.f32.gmra.mxu0 %v961
    %v1250 = vpop.f32.mrf.mxu0
    %v1251 = vadd.f32 %v53, %v1250
    %v1252 = vpop.f32.mrf.mxu0
    %1253 = vmatprep.mubr.f32.mxu0 0.0
    %1254 = vmatmul.mubr.f32.gmra.mxu0 %v964
    %v1255 = vpop.f32.mrf.mxu0
    %v1256 = vadd.f32 %v53, %v1255
    %v1257 = vpop.f32.mrf.mxu0
    %1258 = vmatprep.mubr.f32.mxu0 0.0
    %1259 = vmatmul.mubr.f32.gmra.mxu0 %v967
    %v1260 = vpop.f32.mrf.mxu0
    %v1261 = vadd.f32 %v53, %v1260
    %v1262 = vpop.f32.mrf.mxu0
    %1263 = vmatprep.mubr.f32.mxu0 0.0
    %1264 = vmatmul.mubr.f32.gmra.mxu0 %v970
    %v1265 = vpop.f32.mrf.mxu0
    %v1266 = vadd.f32 %v53, %v1265
    %v1267 = vpop.f32.mrf.mxu0
    %1268 = vmatprep.mubr.f32.mxu0 0.0
    %1269 = vmatmul.mubr.f32.gmra.mxu0 %v973
    %v1270 = vpop.f32.mrf.mxu0
    %v1271 = vadd.f32 %v53, %v1270
    %v1272 = vpop.f32.mrf.mxu0
    %1273 = vmatprep.mubr.f32.mxu0 0.0
    %1274 = vmatmul.mubr.f32.gmra.mxu0 %v976
    %v1275 = vpop.f32.mrf.mxu0
    %v1276 = vadd.f32 %v53, %v1275
    %v1277 = vpop.f32.mrf.mxu0
    %1278 = vmatprep.mubr.f32.mxu0 0.0
    %1279 = vmatmul.mubr.f32.gmra.mxu0 %v979
    %v1280 = vpop.f32.mrf.mxu0
    %v1281 = vadd.f32 %v53, %v1280
    %v1282 = vpop.f32.mrf.mxu0
    %1283 = vmatprep.mubr.f32.mxu0 0.0
    %1284 = vmatmul.mubr.f32.gmra.mxu0 %v982
    %v1285 = vpop.f32.mrf.mxu0
    %v1286 = vadd.f32 %v53, %v1285
    %v1287 = vpop.f32.mrf.mxu0
    %1288 = vmatprep.mubr.f32.mxu0 0.0
    %1289 = vmatmul.mubr.f32.gmra.mxu0 %v985
    %v1290 = vpop.f32.mrf.mxu0
    %v1291 = vadd.f32 %v53, %v1290
    %v1292 = vpop.f32.mrf.mxu0
    %1293 = vmatprep.mubr.f32.mxu0 0.0
    %1294 = vmatmul.mubr.f32.gmra.mxu0 %v988
    %v1295 = vpop.f32.mrf.mxu0
    %v1296 = vadd.f32 %v53, %v1295
    %v1297 = vpop.f32.mrf.mxu0
    %1298 = vmatprep.mubr.f32.mxu0 0.0
    %1299 = vmatmul.mubr.f32.gmra.mxu0 %v991
    %v1300 = vpop.f32.mrf.mxu0
    %v1301 = vadd.f32 %v53, %v1300
    %v1302 = vpop.f32.mrf.mxu0
    %1303 = vmatprep.mubr.f32.mxu0 0.0
    %1304 = vmatmul.mubr.f32.gmra.mxu0 %v994
    %v1305 = vpop.f32.mrf.mxu0
    %v1306 = vadd.f32 %v53, %v1305
    %v1307 = vpop.f32.mrf.mxu0
    %1308 = vmatprep.mubr.f32.mxu0 0.0
    %1309 = vmatmul.mubr.f32.gmra.mxu0 %v997
    %v1310 = vpop.f32.mrf.mxu0
    %v1311 = vadd.f32 %v53, %v1310
    %v1312 = vpop.f32.mrf.mxu0
    %1313 = vdwg.mxu0
    %s1314 = scalar_lea.vmem %s3, 400
    %1315 = vst.msk [vmem:[%s1314] sm:$0xff] %vm649, %v1066
    %1316 = vst.msk [vmem:[%s1314 + $0x8] sm:$0xff] %vm649, %v1071
    %1317 = vst.msk [vmem:[%s1314 + $0x10] sm:$0xff] %vm649, %v1076
    %1318 = vst.msk [vmem:[%s1314 + $0x18] sm:$0xff] %vm649, %v1081
    %1319 = vst.msk [vmem:[%s1314 + $0x20] sm:$0xff] %vm649, %v1086
    %1320 = vst.msk [vmem:[%s1314 + $0x28] sm:$0xff] %vm649, %v1091
    %1321 = vst.msk [vmem:[%s1314 + $0x30] sm:$0xff] %vm649, %v1096
    %1322 = vst.msk [vmem:[%s1314 + $0x38] sm:$0xff] %vm649, %v1101
    %1323 = vst.msk [vmem:[%s1314 + $0x40] sm:$0xff] %vm649, %v1106
    %1324 = vst.msk [vmem:[%s1314 + $0x48] sm:$0xff] %vm649, %v1111
    %1325 = vst.msk [vmem:[%s1314 + $0x50] sm:$0xff] %vm649, %v1116
    %1326 = vst.msk [vmem:[%s1314 + $0x58] sm:$0xff] %vm649, %v1121
    %1327 = vst.msk [vmem:[%s1314 + $0x60] sm:$0xff] %vm649, %v1126
    %1328 = vst.msk [vmem:[%s1314 + $0x68] sm:$0xff] %vm649, %v1131
    %1329 = vst.msk [vmem:[%s1314 + $0x70] sm:$0xff] %vm649, %v1136
    %1330 = vst.msk [vmem:[%s1314 + $0x78] sm:$0xff] %vm649, %v1141
    %1331 = vst.msk [vmem:[%s1314 + $0x80] sm:$0xff] %vm649, %v1146
    %1332 = vst.msk [vmem:[%s1314 + $0x88] sm:$0xff] %vm649, %v1151
    %1333 = vst.msk [vmem:[%s1314 + $0x90] sm:$0xff] %vm649, %v1156
    %1334 = vst.msk [vmem:[%s1314 + $0x98] sm:$0xff] %vm649, %v1161
    %1335 = vst.msk [vmem:[%s1314 + $0xa0] sm:$0xff] %vm649, %v1166
    %1336 = vst.msk [vmem:[%s1314 + $0xa8] sm:$0xff] %vm649, %v1171
    %1337 = vst.msk [vmem:[%s1314 + $0xb0] sm:$0xff] %vm649, %v1176
    %1338 = vst.msk [vmem:[%s1314 + $0xb8] sm:$0xff] %vm649, %v1181
    %1339 = vst.msk [vmem:[%s1314 + $0xc0] sm:$0xff] %vm649, %v1186
    %1340 = vst.msk [vmem:[%s1314 + $0xc8] sm:$0xff] %vm649, %v1191
    %1341 = vst.msk [vmem:[%s1314 + $0xd0] sm:$0xff] %vm649, %v1196
    %1342 = vst.msk [vmem:[%s1314 + $0xd8] sm:$0xff] %vm649, %v1201
    %1343 = vst.msk [vmem:[%s1314 + $0xe0] sm:$0xff] %vm649, %v1206
    %1344 = vst.msk [vmem:[%s1314 + $0xe8] sm:$0xff] %vm649, %v1211
    %1345 = vst.msk [vmem:[%s1314 + $0xf0] sm:$0xff] %vm649, %v1216
    %1346 = vst.msk [vmem:[%s1314 + $0xf8] sm:$0xff] %vm649, %v1221
    %1347 = vst.msk [vmem:[%s1314 + $0x100] sm:$0xff] %vm649, %v1226
    %1348 = vst.msk [vmem:[%s1314 + $0x108] sm:$0xff] %vm649, %v1231
    %1349 = vst.msk [vmem:[%s1314 + $0x110] sm:$0xff] %vm649, %v1236
    %1350 = vst.msk [vmem:[%s1314 + $0x118] sm:$0xff] %vm649, %v1241
    %1351 = vst.msk [vmem:[%s1314 + $0x120] sm:$0xff] %vm649, %v1246
    %1352 = vst.msk [vmem:[%s1314 + $0x128] sm:$0xff] %vm649, %v1251
    %1353 = vst.msk [vmem:[%s1314 + $0x130] sm:$0xff] %vm649, %v1256
    %1354 = vst.msk [vmem:[%s1314 + $0x138] sm:$0xff] %vm649, %v1261
    %1355 = vst.msk [vmem:[%s1314 + $0x140] sm:$0xff] %vm649, %v1266
    %1356 = vst.msk [vmem:[%s1314 + $0x148] sm:$0xff] %vm649, %v1271
    %1357 = vst.msk [vmem:[%s1314 + $0x150] sm:$0xff] %vm649, %v1276
    %1358 = vst.msk [vmem:[%s1314 + $0x158] sm:$0xff] %vm649, %v1281
    %1359 = vst.msk [vmem:[%s1314 + $0x160] sm:$0xff] %vm649, %v1286
    %1360 = vst.msk [vmem:[%s1314 + $0x168] sm:$0xff] %vm649, %v1291
    %1361 = vst.msk [vmem:[%s1314 + $0x170] sm:$0xff] %vm649, %v1296
    %1362 = vst.msk [vmem:[%s1314 + $0x178] sm:$0xff] %vm649, %v1301
    %1363 = vst.msk [vmem:[%s1314 + $0x180] sm:$0xff] %vm649, %v1306
    %1364 = vst.msk [vmem:[%s1314 + $0x188] sm:$0xff] %vm649, %v1311
    // Predicated region
    $region18: #{tpu_custom_call.1} parent=1 // pred_check
      _
    $region19: #{tpu_custom_call.1} parent=1 // pred_check_branch
      %1366 = sbr.rel (0) target = $region21
    $region20: #{tpu_custom_call.1} parent=1 // pred_region
      _
    $region21: #{tpu_custom_call.1} parent=1 // pred_fallthru
      _
    // Predicated region
    $region22: #{tpu_custom_call.1} parent=1 // pred_check
      _
    $region23: #{tpu_custom_call.1} parent=1 // pred_check_branch
      %1368 = sbr.rel (0) target = $region25
    $region24: #{tpu_custom_call.1} parent=1 // pred_region
      _
    $region25: #{tpu_custom_call.1} parent=1 // pred_fallthru
      _
    %1369 = vsyncpa [#allocation3], 1

</llo_original>
